<compile_context>
chip_gen: v5e
topology: v5e:2x2
jax: 0.10.0
libtpu: 0.0.40
codegen_flags: <defaults>
</compile_context>

<pallas_src>
import functools

import jax
import jax.numpy as jnp
import numpy as np
from jax import lax
from jax.experimental import pallas as pl
from jax.experimental.pallas import tpu as pltpu


def _round_up(x, m):
    return ((x + m - 1) // m) * m


def _cdiv(a, b):
    return (a + b - 1) // b


def _vmem_capacity_bytes():
    try:
        return int(pltpu.get_tpu_info().vmem_capacity_bytes)
    except Exception:
        return 64 * 1024 * 1024          # conservative: v7x per-TensorCore VMEM


def _pick_tile_l(L_out, C_in, C_out, stride, halo_block, in_itemsize,
                 out_itemsize, N, max_tile_l, budget_bytes):
    """Largest multiple-of-128 output-column tile fitting the VMEM budget."""
    tile = min(_round_up(max_tile_l, 128), _round_up(max(L_out, 1), 128))
    # v7x has 2 TensorCores: guarantee >= 2 grid steps on the L axis when N==1.
    if N == 1 and L_out > 128:
        tile = min(tile, _round_up(_cdiv(L_out, 2), 128))
    while tile > 128:
        work = (2 * C_in * (tile * stride + halo_block) * in_itemsize   # x blocks (dbl buf)
                + 2 * C_out * tile * out_itemsize)                      # out blocks (dbl buf)
        if work <= budget_bytes:
            break
        tile -= 128
    tile = max(tile, 128)
    if halo_block > 128:
        # keep the halo view's element offset block-aligned
        tile = _round_up(tile, halo_block)
    return tile


# ----------------------------------------------------------------------------
# Kernel: one (batch, L-tile) grid step, everything in NCL layout.
#   xa_ref   : (1, C_in, tile_l*stride)   main input tile
#   xb_ref   : (1, C_in, halo_block)      128-lane halo view (only if needed)
#   w_ref    : (C_out, K*C_in)            BN-scale-folded weights
#   shift_ref: (C_out, 1)                 folded conv-bias + BN shift (f32)
#   o_ref    : (1, C_out, tile_l)         lane-dense output tile (L on lanes)
# ----------------------------------------------------------------------------
def _make_kernel(K, C_in, dilation, stride, tile_l, activation_use, has_halo):
    def kernel(*refs):
        if has_halo:
            xa_ref, xb_ref, w_ref, shift_ref, o_ref = refs
            xw = jnp.concatenate([xa_ref[0], xb_ref[0]], axis=1)
        else:
            xa_ref, w_ref, shift_ref, o_ref = refs
            xw = xa_ref[0]                                   # (C_in, lanes)

        span = (tile_l - 1) * stride + 1
        cols = []
        for k in range(K):                                   # K small & static
            start = k * dilation
            if stride == 1:
                cols.append(xw[:, start:start + tile_l])
            else:
                cols.append(lax.slice(xw, (0, start), (C_in, start + span),
                                      (1, stride)))
        # Fold the K taps into the MXU contraction dim: one dot per grid step.
        rhs = cols[0] if K == 1 else jnp.concatenate(cols, axis=0)  # (K*C_in, tile_l)
        y = jnp.dot(w_ref[...], rhs, preferred_element_type=jnp.float32)
        y = y + shift_ref[...]                               # bias + BN shift
        if activation_use:
            y = jnp.clip(y, 0.0, 20.0)                       # torch.clamp(0, 20)
        o_ref[0] = y.astype(o_ref.dtype)
    return kernel


# ----------------------------------------------------------------------------
# Wrapper reproducing Conv1dBlock.forward
# ----------------------------------------------------------------------------
def conv1d_block_forward(x_ncl, conv_w, conv_b, bn_gamma, bn_beta,
                         bn_mean, bn_var, *, kernel_size, stride, dilation=1,
                         padding='same', bn=True, activation_use=True,
                         bn_eps=1e-3, compute_dtype=jnp.float32,
                         max_tile_l=2048):
    """x_ncl: (N, C_in, L).  conv_w: (C_out, C_in, K) (PyTorch OIH layout)."""
    N, C_in, L = x_ncl.shape
    C_out, _, K = conv_w.shape
    assert K == kernel_size

    # --- padding calculation (verbatim module quirk: uses input_size==C_in) ---
    filter_rows = K
    effective = (filter_rows - 1) * dilation + 1
    input_rows = C_in
    out_rows = (input_rows + stride - 1) // stride
    if padding == 'same':
        add_paddings = max(0, (out_rows - 1) * stride +
                           (filter_rows - 1) * dilation + 1 - input_rows)
    elif padding == 'half':
        add_paddings = K
    else:  # 'invalid'
        add_paddings = 0
    p = add_paddings // 2 if add_paddings > 0 else 0
    if p > 0 and p > L - 1:
        raise ValueError(f"ReflectionPad1d needs pad ({p}) <= L-1 ({L - 1})")
    L_pad = L + 2 * p
    if L_pad < effective:
        raise ValueError("sequence too short for kernel_size/dilation")
    L_out = (L_pad - effective) // stride + 1

    # --- tiling / halo geometry ---
    halo = effective - stride
    halo_block = _round_up(halo, 128) if halo > 0 else 0
    has_halo = halo_block > 0

    in_itemsize = jnp.dtype(compute_dtype).itemsize
    out_dtype = x_ncl.dtype
    out_itemsize = jnp.dtype(out_dtype).itemsize
    cap = _vmem_capacity_bytes()                 # 128 MiB v5e/v6e, 64 MiB v7x
    budget = cap // 4
    vmem_limit = min(cap * 3 // 4, 96 * 1024 * 1024)

    tile_l = _pick_tile_l(L_out, C_in, C_out, stride, halo_block, in_itemsize,
                          out_itemsize, N, max_tile_l, budget)
    num_tiles = _cdiv(L_out, tile_l)
    L_out_pad = num_tiles * tile_l
    TLs = tile_l * stride                        # input columns per main tile
    L_need = num_tiles * TLs + halo_block        # input columns the grid touches

    # --- single prep pass: reflect pad + zero tail (+ dtype cast), NCL kept ---
    xc = x_ncl.astype(compute_dtype)
    parts = []
    if p > 0:
        parts.append(xc[:, :, 1:p + 1][:, :, ::-1])          # left reflection
    parts.append(xc)
    if p > 0:
        parts.append(xc[:, :, L - 1 - p:L - 1][:, :, ::-1])  # right reflection
    tail = max(0, L_need - L_pad)
    if tail > 0:
        parts.append(jnp.zeros((N, C_in, tail), compute_dtype))
    x_prep = parts[0] if len(parts) == 1 else jnp.concatenate(parts, axis=2)

    # --- fold conv bias + BatchNorm (running stats) into weights / shift ---
    f32 = jnp.float32
    if bn:
        scale = (bn_gamma / jnp.sqrt(bn_var + bn_eps)).astype(f32)    # (C_out,)
        shift = ((conv_b - bn_mean) * scale + bn_beta).astype(f32)    # (C_out,)
    else:
        scale = jnp.ones((C_out,), f32)
        shift = conv_b.astype(f32)
    # (C_out, C_in, K) -> (C_out, K, C_in) -> (C_out, K*C_in), scale folded in.
    w2d = (jnp.transpose(conv_w, (0, 2, 1)).reshape(C_out, K * C_in)
           * scale[:, None]).astype(compute_dtype)
    shift2d = shift.reshape(C_out, 1)

    # --- specs: x read through two Blocked views (main tile + 128-lane halo) ---
    in_specs = [pl.BlockSpec((1, C_in, TLs), lambda n, l: (n, 0, l))]
    operands = [x_prep]
    if has_halo:
        ratio = TLs // halo_block                # integer by construction
        in_specs.append(pl.BlockSpec((1, C_in, halo_block),
                                     lambda n, l: (n, 0, (l + 1) * ratio)))
        operands.append(x_prep)
    in_specs += [
        pl.BlockSpec((C_out, K * C_in), lambda n, l: (0, 0)),
        pl.BlockSpec((C_out, 1), lambda n, l: (0, 0)),
    ]
    operands += [w2d, shift2d]

    cost = pl.CostEstimate(
        flops=2 * N * L_out_pad * K * C_in * C_out,
        transcendentals=0,
        bytes_accessed=int(N * C_in * L_need * in_itemsize
                           + C_out * K * C_in * in_itemsize + C_out * 4
                           + N * C_out * L_out_pad * out_itemsize),
    )

    out_padded = pl.pallas_call(
        _make_kernel(K, C_in, dilation, stride, tile_l, activation_use,
                     has_halo),
        out_shape=jax.ShapeDtypeStruct((N, C_out, L_out_pad), out_dtype),
        grid_spec=pltpu.PrefetchScalarGridSpec(
            num_scalar_prefetch=0,
            grid=(N, num_tiles),
            in_specs=in_specs,
            out_specs=pl.BlockSpec((1, C_out, tile_l), lambda n, l: (n, 0, l)),
        ),
        compiler_params=pltpu.CompilerParams(
            dimension_semantics=("parallel", "parallel"),
            vmem_limit_bytes=int(vmem_limit)),
        cost_estimate=cost,
    )(*operands)

    if L_out_pad != L_out:
        out_padded = out_padded[:, :, :L_out]    # drop L tail padding only
    return out_padded                            # already (N, C_out, L_out)


# ----------------------------------------------------------------------------
# Pure-JAX reference (correctness check)
# ----------------------------------------------------------------------------
def _reference(x_ncl, conv_w, conv_b, bn_gamma, bn_beta, bn_mean, bn_var, *,
               kernel_size, stride, dilation, padding, bn, activation_use,
               bn_eps=1e-3):
    N, C_in, L = x_ncl.shape
    filter_rows = kernel_size
    input_rows = C_in                            # module quirk: uses input_size
    out_rows = (input_rows + stride - 1) // stride
    if padding == 'same':
        add_paddings = max(0, (out_rows - 1) * stride +
                           (filter_rows - 1) * dilation + 1 - input_rows)
    elif padding == 'half':
        add_paddings = kernel_size
    else:
        add_paddings = 0
    p = add_paddings // 2 if add_paddings > 0 else 0
    if p > 0:
        x_ncl = jnp.pad(x_ncl, ((0, 0), (0, 0), (p, p)), mode='reflect')
    y = lax.conv_general_dilated(
        x_ncl, conv_w, window_strides=(stride,), padding='VALID',
        rhs_dilation=(dilation,), dimension_numbers=('NCH', 'OIH', 'NCH'))
    y = y + conv_b[None, :, None]
    if bn:
        y = (y - bn_mean[None, :, None]) / jnp.sqrt(bn_var[None, :, None] + bn_eps)
        y = y * bn_gamma[None, :, None] + bn_beta[None, :, None]
    if activation_use:
        y = jnp.clip(y, 0.0, 20.0)
    return y


if __name__ == "__main__":
    # Module config: Conv1dBlock(input_size=4, output_size=8, kernel_size=(3,),
    #                            stride=1, dilation=1, padding='same', bn=True)
    N, C_in, L = 2, 4, 16
    C_out, K, stride, dilation = 8, 3, 1, 1

    key = jax.random.PRNGKey(0)
    kx, kw, kb, kg, kbeta, km, kv, kx2 = jax.random.split(key, 8)

    x = jax.random.normal(kx, (N, C_in, L), dtype=jnp.float32)
    conv_w = jax.random.normal(kw, (C_out, C_in, K), dtype=jnp.float32) * 0.2
    conv_b = jax.random.normal(kb, (C_out,), dtype=jnp.float32) * 0.1
    bn_gamma = 1.0 + 0.1 * jax.random.normal(kg, (C_out,), dtype=jnp.float32)
    bn_beta = 0.1 * jax.random.normal(kbeta, (C_out,), dtype=jnp.float32)
    bn_mean = 0.1 * jax.random.normal(km, (C_out,), dtype=jnp.float32)
    bn_var = 1.0 + 0.1 * jnp.abs(jax.random.normal(kv, (C_out,), dtype=jnp.float32))

    params = (conv_w, conv_b, bn_gamma, bn_beta, bn_mean, bn_var)
    run = functools.partial(conv1d_block_forward, kernel_size=K, stride=stride,
                            dilation=dilation, padding='same', bn=True,
                            activation_use=True)
    ref_fn = functools.partial(_reference, kernel_size=K, stride=stride,
                               dilation=dilation, padding='same', bn=True,
                               activation_use=True)

    # 1) small shape, single tile, f32 (matches PyTorch numerics)
    out = jax.block_until_ready(run(x, *params))
    ref = jax.block_until_ready(ref_fn(x, *params))
    np.testing.assert_allclose(np.asarray(out), np.asarray(ref),
                               rtol=1e-5, atol=1e-4)

    # 2) longer sequence, multiple L-tiles (exercises the halo view across tile
    #    boundaries and the trailing L slice), f32
    x2 = jax.random.normal(kx2, (N, C_in, 700), dtype=jnp.float32)
    out2 = jax.block_until_ready(run(x2, *params, max_tile_l=256))
    ref2 = jax.block_until_ready(ref_fn(x2, *params))
    np.testing.assert_allclose(np.asarray(out2), np.asarray(ref2),
                               rtol=1e-5, atol=1e-4)

    # 3) bf16 compute path (recommended on v5e/v6e/v7x: halves HBM read
    #    traffic; MXU accumulation stays f32) — loosened tolerance
    out_bf16 = jax.block_until_ready(run(x, *params,
                                         compute_dtype=jnp.bfloat16))
    np.testing.assert_allclose(np.asarray(out_bf16), np.asarray(ref),
                               rtol=5e-2, atol=1e-1)

    print("KERNEL_OK")
</pallas_src>

<mosaic_0001>
module attributes {stable_mosaic.version = 11 : i64} {
  func.func @kernel(%arg0: i32, %arg1: i32, %arg2: memref<1x4x128xf32, #tpu.memory_space<vmem>>, %arg3: memref<1x4x128xf32, #tpu.memory_space<vmem>>, %arg4: memref<8x12xf32, #tpu.memory_space<vmem>>, %arg5: memref<8x1xf32, #tpu.memory_space<vmem>>, %arg6: memref<1x8x128xf32, #tpu.memory_space<vmem>>) attributes {dimension_semantics = [#tpu.dimension_semantics<parallel>, #tpu.dimension_semantics<parallel>], iteration_bounds = array<i64: 2, 1>, scalar_prefetch = 0 : i64, scratch_operands = 0 : i64, tpu.core_type = #tpu.core_type<tc>, window_params = [{transform_indices = @transform_0, window_bounds = array<i64: 1, 4, 128>}, {transform_indices = @transform_1, window_bounds = array<i64: 1, 4, 128>}, {pipeline_mode = #tpu.pipeline_mode<synchronous>, transform_indices = @transform_2, window_bounds = array<i64: 8, 12>}, {pipeline_mode = #tpu.pipeline_mode<synchronous>, transform_indices = @transform_3, window_bounds = array<i64: 8, 1>}, {transform_indices = @transform_4, window_bounds = array<i64: 1, 8, 128>}]} {
    %c0 = arith.constant 0 : index
    %c0_0 = arith.constant 0 : index
    %c0_1 = arith.constant 0 : index
    %0 = vector.load %arg2[%c0, %c0_0, %c0_1] : memref<1x4x128xf32, #tpu.memory_space<vmem>>, vector<1x4x128xf32>
    %1 = vector.shape_cast %0 : vector<1x4x128xf32> to vector<4x128xf32>
    %c0_2 = arith.constant 0 : index
    %c0_3 = arith.constant 0 : index
    %c0_4 = arith.constant 0 : index
    %2 = vector.load %arg3[%c0_2, %c0_3, %c0_4] : memref<1x4x128xf32, #tpu.memory_space<vmem>>, vector<1x4x128xf32>
    %3 = vector.shape_cast %2 : vector<1x4x128xf32> to vector<4x128xf32>
    %4 = tpu.concatenate %1, %3 in 1 : vector<4x128xf32>, vector<4x128xf32> -> vector<4x256xf32>
    %5 = vector.extract_strided_slice %4 {offsets = [0, 0], sizes = [4, 128], strides = [1, 1]} : vector<4x256xf32> to vector<4x128xf32>
    %6 = vector.extract_strided_slice %4 {offsets = [0, 1], sizes = [4, 128], strides = [1, 1]} : vector<4x256xf32> to vector<4x128xf32>
    %7 = vector.extract_strided_slice %4 {offsets = [0, 2], sizes = [4, 128], strides = [1, 1]} : vector<4x256xf32> to vector<4x128xf32>
    %8 = tpu.concatenate %5, %6, %7 in 0 : vector<4x128xf32>, vector<4x128xf32>, vector<4x128xf32> -> vector<12x128xf32>
    %c0_5 = arith.constant 0 : index
    %c0_6 = arith.constant 0 : index
    %9 = vector.load %arg4[%c0_5, %c0_6] : memref<8x12xf32, #tpu.memory_space<vmem>>, vector<8x12xf32>
    %cst = arith.constant dense<0.000000e+00> : vector<8x128xf32>
    %10 = tpu.matmul %9, %8, %cst {dimension_numbers = #tpu.dot_dimension_numbers<[1], [0], [0], [1], [0, 0, 1, 1], [], []>} : vector<8x12xf32>, vector<12x128xf32>, vector<8x128xf32> -> vector<8x128xf32>
    %c0_7 = arith.constant 0 : index
    %c0_8 = arith.constant 0 : index
    %11 = vector.load %arg5[%c0_7, %c0_8] : memref<8x1xf32, #tpu.memory_space<vmem>>, vector<8x1xf32>
    %12 = vector.broadcast %11 : vector<8x1xf32> to vector<8x128xf32>
    %13 = arith.addf %10, %12 : vector<8x128xf32>
    %cst_9 = arith.constant 0.000000e+00 : f32
    %cst_10 = arith.constant 2.000000e+01 : f32
    %14 = vector.broadcast %cst_9 : f32 to vector<8x128xf32>
    %15 = arith.maximumf %14, %13 : vector<8x128xf32>
    %16 = vector.broadcast %cst_10 : f32 to vector<8x128xf32>
    %17 = arith.minimumf %16, %15 : vector<8x128xf32>
    %c0_11 = arith.constant 0 : index
    %c0_12 = arith.constant 0 : index
    %c0_13 = arith.constant 0 : index
    %18 = vector.load %arg6[%c0_11, %c0_12, %c0_13] : memref<1x8x128xf32, #tpu.memory_space<vmem>>, vector<1x8x128xf32>
    %19 = vector.shape_cast %18 : vector<1x8x128xf32> to vector<8x128xf32>
    %20 = vector.shape_cast %17 : vector<8x128xf32> to vector<1x8x128xf32>
    tpu.vector_store %arg6[%c0_11, %c0_12, %c0_13], %20 {strides = array<i32>} : memref<1x8x128xf32, #tpu.memory_space<vmem>>, vector<1x8x128xf32>,
    return
  }
  func.func @transform_0(%arg0: i32, %arg1: i32) -> (i32, i32, i32) {
    %c0_i32 = arith.constant 0 : i32
    %c0_i32_0 = arith.constant 0 : i32
    return %arg0, %c0_i32, %arg1 : i32, i32, i32
  }
  func.func @transform_1(%arg0: i32, %arg1: i32) -> (i32, i32, i32) {
    %c1_i32 = arith.constant 1 : i32
    %0 = arith.addi %arg1, %c1_i32 : i32
    %c1_i32_0 = arith.constant 1 : i32
    %1 = arith.muli %0, %c1_i32_0 : i32
    %c0_i32 = arith.constant 0 : i32
    %c0_i32_1 = arith.constant 0 : i32
    return %arg0, %c0_i32, %1 : i32, i32, i32
  }
  func.func @transform_2(%arg0: i32, %arg1: i32) -> (i32, i32) {
    %c0_i32 = arith.constant 0 : i32
    %c0_i32_0 = arith.constant 0 : i32
    %c0_i32_1 = arith.constant 0 : i32
    return %c0_i32, %c0_i32_0 : i32, i32
  }
  func.func @transform_3(%arg0: i32, %arg1: i32) -> (i32, i32) {
    %c0_i32 = arith.constant 0 : i32
    %c0_i32_0 = arith.constant 0 : i32
    %c0_i32_1 = arith.constant 0 : i32
    return %c0_i32, %c0_i32_0 : i32, i32
  }
  func.func @transform_4(%arg0: i32, %arg1: i32) -> (i32, i32, i32) {
    %c0_i32 = arith.constant 0 : i32
    %c0_i32_0 = arith.constant 0 : i32
    return %arg0, %c0_i32, %arg1 : i32, i32, i32
  }
}

</mosaic_0001>

<llo_original>
// kernel: tpu_custom_call.1
$region0: #{tpu_custom_call.1}
  #allocation0 [shape = 'u32[]', space=smem, size = 0x4, offset = 0x4, fixed_abs, tag = 'smem constant byte address 0x4 - core index']
  #allocation1 [shape = 'u32[72,128]{1,0:T(1,128)}', space=vmem, size = 0x9000, scoped, tag = 'internal scratch']
  %s0 = inlined_call_operand.hbm [shape: f32[2,4,256], index: 0, kind: input, shape index: {}]
  %s1 = inlined_call_operand.hbm [shape: f32[2,4,256], index: 1, kind: input, shape index: {}]
  %s2 = inlined_call_operand.vmem [shape: f32[8,12], index: 2, kind: input, shape index: {}]
  %s3 = inlined_call_operand.vmem [shape: f32[8,1], index: 3, kind: input, shape index: {}]
  %s4 = inlined_call_operand.hbm [shape: f32[2,8,128], index: 4, kind: output, shape index: {}]
  %s5 = sld [smem:[#allocation0]]
  $region57: #{tpu_custom_call.1} parent=0
    _
  %s7 = ssub.s32 1, %s5
  %s8 = scalar_select 0, %s7, %s5
  $region1: #{tpu_custom_call.1} parent=0
    #allocation2 [shape = 'u8[4096]{0}', space=vmem, size = 0x1000, scoped, tag = 'input window, operand 0']
    #allocation3 [shape = 's32[2]{0}', space=sflag, size = 0x8, scoped, tag = 'scoped memory for tpu_custom_call.1']
    #allocation4 [shape = 's32[2]{0}', space=sflag, size = 0x8, scoped, tag = 'scoped memory for tpu_custom_call.1']
    #allocation5 [shape = 'u8[4096]{0}', space=vmem, size = 0x1000, scoped, tag = 'input window, operand 1']
    #allocation6 [shape = 's32[2]{0}', space=sflag, size = 0x8, scoped, tag = 'scoped memory for tpu_custom_call.1']
    #allocation7 [shape = 'u8[8192]{0}', space=vmem, size = 0x2000, scoped, tag = 'output window, operand 0']
    %9 = vsyncpa [#allocation3], 0
    %s10 = scalar_lea.sflag [#allocation3], 1
    %11 = vsyncpa %s10, 0
    %12 = vsyncpa [#allocation6], 0
    %s13 = scalar_lea.sflag [#allocation6], 1
    %14 = vsyncpa %s13, 0
    %15 = vsyncpa [#allocation4], 0
    %s16 = scalar_lea.sflag [#allocation4], 1
    %17 = vsyncpa %s16, 0
    loop: start=0, step=1, limit=4
    $region2: #{tpu_custom_call.1} parent=1 // loop_pre_header
      _
    $region3: #{tpu_custom_call.1} parent=1 // loop_header
      %s19 = sphi 0, %s23
      %p20 = scmp.ge.s32.totalorder %s19, 4
      %s26 = sphi 0, %s38
      %s27 = sphi 0, %s34
      %s28 = sphi 0, %s26
      %s29 = sphi 0, %s27
      %s30 = sphi 0, %s28
      %s31 = sphi 0, %s29
      %s43 = sphi 0, %s45
      %s46 = sphi 0, %s43
      %s47 = sphi 0, %s46
      %s63 = sphi 0, %s47
      %s73 = sphi 0, %s75
      %s76 = sphi 0, %s73
      %s77 = sphi 0, %s76
      %s93 = sphi 0, %s77
      %s97 = sphi 0, %s97
      %s99 = sphi 0, %s97
      %s100 = sphi 0, %s99
      %s114 = sphi 0, %s100
      %s118 = sphi 0, %s118
      %s120 = sphi 0, %s118
      %s121 = sphi 0, %s120
      %s135 = sphi 0, %s121
      %s143 = sphi 0, %s145
      %s146 = sphi 0, %s143
      %s147 = sphi 0, %s146
      %s163 = sphi 0, %s147
    $region4: #{tpu_custom_call.1} parent=1 // loop_header_branch
      %22 = sbr.rel (%p20) target = $region8
    $region5: #{tpu_custom_call.1} parent=1 // loop_body
      %s24 = ssub.s32 %s19, 1
      %s25 = ssub.s32 %s19, 2
      %s32 = sadd.s32 1, %s27
      %p33 = scmp.ge.s32.totalorder %s32, 1
      %s34 = scalar_select %p33, 0, %s32
      %s35 = sadd.s32 1, %s26
      %s36 = scalar_select %p33, %s35, %s26
      %p37 = scmp.ge.s32.totalorder %s36, 2
      %s38 = scalar_select %p37, 0, %s36
      %s39 = ssub.s32 %s26, %s38
      %s40 = ssub.s32 %s27, %s34
      %s41 = sor.u32 %s39, %s40
      %p42 = scmp.eq.s32.totalorder %s41, 0
      %s44 = sadd.s32 %s43, 1
      %s45 = scalar_select %p42, %s43, %s44
      %p48 = pneg %p42
      %p49 = scmp.eq.s32.totalorder %s19, 1
      %p50 = por %p48, %p49
      %p51 = scmp.ne.s32.totalorder %s43, %s46
      %p52 = scmp.eq.s32.totalorder %s19, 0
      %p53 = por %p51, %p52
      %p54 = scmp.ne.s32.totalorder %s43, %s46
      %p55 = scmp.eq.s32.totalorder %s24, 1
      %p56 = por %p54, %p55
      %p57 = scmp.ne.s32.totalorder %s46, %s47
      %p58 = scmp.eq.s32.totalorder %s24, 0
      %p59 = por %p57, %p58
      %p60 = scmp.ne.s32.totalorder %s46, %s47
      %p61 = scmp.eq.s32.totalorder %s25, 1
      %p62 = por %p60, %p61
      %p64 = scmp.ne.s32.totalorder %s47, %s63
      %p65 = scmp.eq.s32.totalorder %s25, 0
      %p66 = por %p64, %p65
      %s67 = sadd.s32 %s27, 1
      %s68 = sadd.s32 %s34, 1
      %s69 = ssub.s32 %s26, %s38
      %s70 = ssub.s32 %s67, %s68
      %s71 = sor.u32 %s69, %s70
      %p72 = scmp.eq.s32.totalorder %s71, 0
      %s74 = sadd.s32 %s73, 1
      %s75 = scalar_select %p72, %s73, %s74
      %p78 = pneg %p72
      %p79 = scmp.eq.s32.totalorder %s19, 1
      %p80 = por %p78, %p79
      %p81 = scmp.ne.s32.totalorder %s73, %s76
      %p82 = scmp.eq.s32.totalorder %s19, 0
      %p83 = por %p81, %p82
      %p84 = scmp.ne.s32.totalorder %s73, %s76
      %p85 = scmp.eq.s32.totalorder %s24, 1
      %p86 = por %p84, %p85
      %p87 = scmp.ne.s32.totalorder %s76, %s77
      %p88 = scmp.eq.s32.totalorder %s24, 0
      %p89 = por %p87, %p88
      %p90 = scmp.ne.s32.totalorder %s76, %s77
      %p91 = scmp.eq.s32.totalorder %s25, 1
      %p92 = por %p90, %p91
      %p94 = scmp.ne.s32.totalorder %s77, %s93
      %p95 = scmp.eq.s32.totalorder %s25, 0
      %p96 = por %p94, %p95
      %s98 = sadd.s32 %s97, 1
      %p101 = scmp.eq.s32.totalorder %s19, 1
      %p102 = scmp.ne.s32.totalorder %s97, %s99
      %p103 = scmp.eq.s32.totalorder %s19, 0
      %p104 = por %p102, %p103
      %p105 = scmp.ne.s32.totalorder %s97, %s99
      %p106 = scmp.eq.s32.totalorder %s24, 1
      %p107 = por %p105, %p106
      %p108 = scmp.ne.s32.totalorder %s99, %s100
      %p109 = scmp.eq.s32.totalorder %s24, 0
      %p110 = por %p108, %p109
      %p111 = scmp.ne.s32.totalorder %s99, %s100
      %p112 = scmp.eq.s32.totalorder %s25, 1
      %p113 = por %p111, %p112
      %p115 = scmp.ne.s32.totalorder %s100, %s114
      %p116 = scmp.eq.s32.totalorder %s25, 0
      %p117 = por %p115, %p116
      %s119 = sadd.s32 %s118, 1
      %p122 = scmp.eq.s32.totalorder %s19, 1
      %p123 = scmp.ne.s32.totalorder %s118, %s120
      %p124 = scmp.eq.s32.totalorder %s19, 0
      %p125 = por %p123, %p124
      %p126 = scmp.ne.s32.totalorder %s118, %s120
      %p127 = scmp.eq.s32.totalorder %s24, 1
      %p128 = por %p126, %p127
      %p129 = scmp.ne.s32.totalorder %s120, %s121
      %p130 = scmp.eq.s32.totalorder %s24, 0
      %p131 = por %p129, %p130
      %p132 = scmp.ne.s32.totalorder %s120, %s121
      %p133 = scmp.eq.s32.totalorder %s25, 1
      %p134 = por %p132, %p133
      %p136 = scmp.ne.s32.totalorder %s121, %s135
      %p137 = scmp.eq.s32.totalorder %s25, 0
      %p138 = por %p136, %p137
      %s139 = ssub.s32 %s26, %s38
      %s140 = ssub.s32 %s27, %s34
      %s141 = sor.u32 %s139, %s140
      %p142 = scmp.eq.s32.totalorder %s141, 0
      %s144 = sadd.s32 %s143, 1
      %s145 = scalar_select %p142, %s143, %s144
      %p148 = pneg %p142
      %p149 = scmp.eq.s32.totalorder %s19, 1
      %p150 = por %p148, %p149
      %p151 = scmp.ne.s32.totalorder %s143, %s146
      %p152 = scmp.eq.s32.totalorder %s19, 0
      %p153 = por %p151, %p152
      %p154 = scmp.ne.s32.totalorder %s143, %s146
      %p155 = scmp.eq.s32.totalorder %s24, 1
      %p156 = por %p154, %p155
      %p157 = scmp.ne.s32.totalorder %s146, %s147
      %p158 = scmp.eq.s32.totalorder %s24, 0
      %p159 = por %p157, %p158
      %p160 = scmp.ne.s32.totalorder %s146, %s147
      %p161 = scmp.eq.s32.totalorder %s25, 1
      %p162 = por %p160, %p161
      %p164 = scmp.ne.s32.totalorder %s147, %s163
      %p165 = scmp.eq.s32.totalorder %s25, 0
      %p166 = por %p164, %p165
      %p167 = scmp.le.s32.totalorder 1, %s19
      %p168 = scmp.lt.s32.totalorder %s19, 3
      %p169 = pnand %p167, %p168
      %p170 = pneg %p169
      // Predicated region
      $region9: #{tpu_custom_call.1} parent=5 // pred_check
        _
      $region10: #{tpu_custom_call.1} parent=5 // pred_check_branch
        %172 = sbr.rel (%p169) target = $region12
      $region11: #{tpu_custom_call.1} parent=5 // pred_region
        %s173 = ssub.s32 %s19, 1
        // Predicated region
        $region13: #{tpu_custom_call.1} parent=11 // pred_check
          %p174 = pneg %p110
        $region14: #{tpu_custom_call.1} parent=11 // pred_check_branch
          %176 = sbr.rel (%p174) target = $region16
        $region15: #{tpu_custom_call.1} parent=11 // pred_region
          _
        $region16: #{tpu_custom_call.1} parent=11 // pred_fallthru
          _
        // Predicated region
        $region17: #{tpu_custom_call.1} parent=11 // pred_check
          %p177 = pneg %p131
        $region18: #{tpu_custom_call.1} parent=11 // pred_check_branch
          %179 = sbr.rel (%p177) target = $region20
        $region19: #{tpu_custom_call.1} parent=11 // pred_region
          _
        $region20: #{tpu_custom_call.1} parent=11 // pred_fallthru
          _
      $region12: #{tpu_custom_call.1} parent=5 // pred_fallthru
        _
      %p180 = scmp.lt.s32.totalorder %s19, 2
      // Predicated region
      $region21: #{tpu_custom_call.1} parent=5 // pred_check
        %p181 = pneg %p180
      $region22: #{tpu_custom_call.1} parent=5 // pred_check_branch
        %183 = sbr.rel (%p181) target = $region24
      $region23: #{tpu_custom_call.1} parent=5 // pred_region
        // Predicated region
        $region25: #{tpu_custom_call.1} parent=23 // pred_check
          %p184 = pneg %p53
        $region26: #{tpu_custom_call.1} parent=23 // pred_check_branch
          %186 = sbr.rel (%p184) target = $region28
        $region27: #{tpu_custom_call.1} parent=23 // pred_region
          %s187 = sand.u32 %s43, 1
          %s188 = scalar_lea.sflag [#allocation3], %s187
          %s189 = sand.u32 %s43, 1
          %s190 = smul.addr %s189, 4
          %s191 = scalar_lea.vmem [#allocation2], %s190
          %193 = vsyncadd %s188, 0
          %s194 = smul.addr %s26, 2
          %s195 = sadd.s32 %s27, %s194
          %s196 = smul.addr %s195, 4
          %s197 = scalar_lea.hbm %s0, %s196
          %s199 = sshll.u32 %s197, 4
          %s200 = int_to_ptr.hbm [resolvable:$true] %s199
          %s201 = sshll.u32 %s191, 4
          %s202 = int_to_ptr.vmem [resolvable:$true] %s201
          %204 = dma.hbm_to_vmem [thread:$0]  %s200, 64, %s202, %s188
        $region28: #{tpu_custom_call.1} parent=23 // pred_fallthru
          _
        // Predicated region
        $region29: #{tpu_custom_call.1} parent=23 // pred_check
          %p205 = pneg %p83
        $region30: #{tpu_custom_call.1} parent=23 // pred_check_branch
          %207 = sbr.rel (%p205) target = $region32
        $region31: #{tpu_custom_call.1} parent=23 // pred_region
          %s208 = sand.u32 %s73, 1
          %s209 = scalar_lea.sflag [#allocation6], %s208
          %s210 = sand.u32 %s73, 1
          %s211 = smul.addr %s210, 4
          %s212 = scalar_lea.vmem [#allocation5], %s211
          %s213 = sadd.s32 %s27, 1
          %215 = vsyncadd %s209, 0
          %s216 = smul.addr %s26, 2
          %s217 = sadd.s32 %s213, %s216
          %s218 = smul.addr %s217, 4
          %s219 = scalar_lea.hbm %s1, %s218
          %s221 = sshll.u32 %s219, 4
          %s222 = int_to_ptr.hbm [resolvable:$true] %s221
          %s223 = sshll.u32 %s212, 4
          %s224 = int_to_ptr.vmem [resolvable:$true] %s223
          %226 = dma.hbm_to_vmem [thread:$0]  %s222, 64, %s224, %s209
        $region32: #{tpu_custom_call.1} parent=23 // pred_fallthru
          _
      $region24: #{tpu_custom_call.1} parent=5 // pred_fallthru
        _
      %p227 = scmp.le.s32.totalorder 1, %s19
      %p228 = scmp.lt.s32.totalorder %s19, 3
      %p229 = pnand %p227, %p228
      %p230 = pneg %p229
      // Predicated region
      $region33: #{tpu_custom_call.1} parent=5 // pred_check
        _
      $region34: #{tpu_custom_call.1} parent=5 // pred_check_branch
        %232 = sbr.rel (%p229) target = $region36
      $region35: #{tpu_custom_call.1} parent=5 // pred_region
        %s233 = ssub.s32 %s19, 1
        %s234 = sand.u32 %s46, 1
        %s235 = scalar_lea.sflag [#allocation3], %s234
        %s236 = sand.u32 %s46, 1
        %s237 = smul.addr %s236, 4
        %s238 = scalar_lea.vmem [#allocation2], %s237
        // Predicated region
        $region37: #{tpu_custom_call.1} parent=35 // pred_check
          %p239 = pneg %p59
        $region38: #{tpu_custom_call.1} parent=35 // pred_check_branch
          %241 = sbr.rel (%p239) target = $region40
        $region39: #{tpu_custom_call.1} parent=35 // pred_region
          %243 = dma.done %s235, 64
        $region40: #{tpu_custom_call.1} parent=35 // pred_fallthru
          _
        %s244 = sand.u32 %s76, 1
        %s245 = scalar_lea.sflag [#allocation6], %s244
        %s246 = sand.u32 %s76, 1
        %s247 = smul.addr %s246, 4
        %s248 = scalar_lea.vmem [#allocation5], %s247
        // Predicated region
        $region41: #{tpu_custom_call.1} parent=35 // pred_check
          %p249 = pneg %p89
        $region42: #{tpu_custom_call.1} parent=35 // pred_check_branch
          %251 = sbr.rel (%p249) target = $region44
        $region43: #{tpu_custom_call.1} parent=35 // pred_region
          %253 = dma.done %s245, 64
        $region44: #{tpu_custom_call.1} parent=35 // pred_fallthru
          _
        %s254 = sand.u32 %s46, 1
        %s255 = scalar_lea.sflag [#allocation3], %s254
        %s256 = sand.u32 %s46, 1
        %s257 = smul.addr %s256, 4
        %s258 = scalar_lea.vmem [#allocation2], %s257
        %p259 = pneg %p59
        %p260 = pneg %p56
        %s261 = sand.u32 %s76, 1
        %s262 = scalar_lea.sflag [#allocation6], %s261
        %s263 = sand.u32 %s76, 1
        %s264 = smul.addr %s263, 4
        %s265 = scalar_lea.vmem [#allocation5], %s264
        %p266 = pneg %p89
        %p267 = pneg %p86
        %p268 = pneg %p110
        %p269 = pneg %p107
        %p270 = pneg %p131
        %p271 = pneg %p128
        %p272 = pneg %p159
        %p273 = pneg %p156
        %s274 = sand.u32 %s146, 1
        %s275 = scalar_lea.sflag [#allocation4], %s274
        %s276 = sand.u32 %s146, 1
        %s277 = smul.addr %s276, 8
        %s278 = scalar_lea.vmem [#allocation7], %s277
        %s279 = sadd.s32 %s29, 1
        %v280 = vld [vmem:[%s238] sm:$0xf]
        %v281 = vld [vmem:[%s248] sm:$0xf]
        %v284 = vrot.slane %v280, 4
        %v285 = vrot.slane %v281, 4
        %286 = vrot.lane.b32.xlu0 %v284, 127
        %v287 = vpop.permute.xlu0 %286
        %288 = vrot.lane.b32.xlu0 %v285, 127
        %v289 = vpop.permute.xlu0 %288
        %vm290 = vcmask 1039360
        %v291 = vsel %vm290, %v287, %v289
        %293 = vrot.lane.b32.xlu0 %v280, 126
        %v294 = vpop.permute.xlu0 %293
        %295 = vrot.lane.b32.xlu0 %v281, 126
        %v296 = vpop.permute.xlu0 %295
        %vm297 = vcmask 1031168
        %v298 = vsel %vm297, %v294, %v296
        %vm299 = vcmask 1043456
        %v300 = vsel %vm299, %v280, %v291
        %v301 = vld [vmem:[%s2] sm:$0xff]
        %v302 = vld [vmem:[%s3] sm:$0xff]
        %304 = vset.pattern.permute.xlu0 0
        %305 = vperm.xlu0 %304, %v302
        %v306 = vpop.permute.xlu0 %305
        %vm308 = vcmask 97280
        %v310 = vsel %vm308, %v301, 0
        %v312 = vsel %vm299, %v298, 0
        %314 = vmatpush.msra.mxu0 0.0
        %315 = vmatpush.msra.mxu0 0.0
        %316 = vmatpush.msra.mxu0 0.0
        %317 = vmatpush.msra.mxu0 0.0
        %318 = vmatpush.msra.mxu0 0.0
        %319 = vmatpush.msra.mxu0 0.0
        %320 = vmatpush.msra.mxu0 0.0
        %321 = vmatpush.msra.mxu0 0.0
        %322 = vmatpush.msra.mxu0 0.0
        %323 = vmatpush.msra.mxu0 0.0
        %324 = vmatpush.msra.mxu0 0.0
        %325 = vmatpush.msra.mxu0 0.0
        %326 = vmatpush.msra.mxu0 0.0
        %327 = vmatpush.msra.mxu0 0.0
        %328 = vmatpush.msra.mxu0 %v312
        %329 = vmatpush.msra.mxu0 %v300
        %330 = vmatmul.f32.gmra.mxu0 %v310
        %v331 = vpop.f32.mrf.mxu0
        %v332 = vadd.f32 %v306, %v331
        %333 = vdwg.mxu0
        %v334 = vmax.f32 %v332, 0.0
        %v335 = vmin.f32 %v334, 20.0
        %336 = vst [vmem:[%s278] sm:$0xff] %v335
        %s337 = sand.u32 %s146, 1
        %s338 = scalar_lea.sflag [#allocation4], %s337
        %s339 = sand.u32 %s146, 1
        %s340 = smul.addr %s339, 8
        %s341 = scalar_lea.vmem [#allocation7], %s340
        // Predicated region
        $region45: #{tpu_custom_call.1} parent=35 // pred_check
          %p342 = pneg %p156
        $region46: #{tpu_custom_call.1} parent=35 // pred_check_branch
          %344 = sbr.rel (%p342) target = $region48
        $region47: #{tpu_custom_call.1} parent=35 // pred_region
          %346 = vsyncadd %s338, 0
          %s347 = sadd.s32 %s29, %s28
          %s348 = smul.addr %s347, 8
          %s349 = scalar_lea.hbm %s4, %s348
          %s351 = sshll.u32 %s341, 4
          %s352 = int_to_ptr.vmem [resolvable:$true] %s351
          %s353 = sshll.u32 %s349, 4
          %s354 = int_to_ptr.hbm [resolvable:$true] %s353
          %356 = dma.vmem_to_hbm [thread:$0]  %s352, 128, %s354, %s338
        $region48: #{tpu_custom_call.1} parent=35 // pred_fallthru
          _
      $region36: #{tpu_custom_call.1} parent=5 // pred_fallthru
        _
      %p357 = scmp.le.s32.totalorder 2, %s19
      // Predicated region
      $region49: #{tpu_custom_call.1} parent=5 // pred_check
        %p358 = pneg %p357
      $region50: #{tpu_custom_call.1} parent=5 // pred_check_branch
        %360 = sbr.rel (%p358) target = $region52
      $region51: #{tpu_custom_call.1} parent=5 // pred_region
        %s361 = ssub.s32 %s19, 2
        // Predicated region
        $region53: #{tpu_custom_call.1} parent=51 // pred_check
          %p362 = pneg %p162
        $region54: #{tpu_custom_call.1} parent=51 // pred_check_branch
          %364 = sbr.rel (%p362) target = $region56
        $region55: #{tpu_custom_call.1} parent=51 // pred_region
          %s365 = sand.u32 %s147, 1
          %s366 = scalar_lea.sflag [#allocation4], %s365
          %s367 = sand.u32 %s147, 1
          %s368 = smul.addr %s367, 8
          %s369 = scalar_lea.vmem [#allocation7], %s368
          %371 = dma.done %s366, 128
        $region56: #{tpu_custom_call.1} parent=51 // pred_fallthru
          _
      $region52: #{tpu_custom_call.1} parent=5 // pred_fallthru
        _
    $region6: #{tpu_custom_call.1} parent=1 // loop_footer
      %s23 = sadd.s32 1, %s19
    $region7: #{tpu_custom_call.1} parent=1 // loop_footer_branch
      %18 = sbr.rel target = $region3
    $region8: #{tpu_custom_call.1} parent=1 // loop_exit
      _
    %372 = vsyncpa [#allocation3], 1
    %s373 = scalar_lea.sflag [#allocation3], 1
    %374 = vsyncpa %s373, 1
    %375 = vsyncpa [#allocation6], 1
    %s376 = scalar_lea.sflag [#allocation6], 1
    %377 = vsyncpa %s376, 1
    %378 = vsyncpa [#allocation4], 1
    %s379 = scalar_lea.sflag [#allocation4], 1
    %380 = vsyncpa %s379, 1

</llo_original>
